<compile_context>
chip_gen: v7x
topology: tpu7x:2x2x1
jax: 0.10.0
libtpu: 0.0.40
codegen_flags: <defaults>
</compile_context>

<pallas_src>
import jax
import jax.numpy as jnp
from jax import lax
from jax.experimental import pallas as pl
from jax.experimental.pallas import tpu as pltpu


def _round_up(x, m):
    return (x + m - 1) // m * m


# ---------------------------------------------------------------------------
# Single-shot kernel: whole problem lives in VMEM, one invocation, no padding.
# Full-dim blocks are exempt from the (8,128) divisibility rule.
# ---------------------------------------------------------------------------
def _linear_small_kernel(a_ref, w_ref, b_ref, o_ref):
    # a: [M, K], w: [N, K] (PyTorch layout), b: [1, N], o: [M, N]
    acc = lax.dot_general(
        a_ref[...],
        w_ref[...],
        dimension_numbers=(((1,), (1,)), ((), ())),  # contract K with K
        preferred_element_type=jnp.float32,
    )
    o_ref[...] = (acc + b_ref[...].astype(jnp.float32)).astype(o_ref.dtype)


# ---------------------------------------------------------------------------
# Tiled kernel, f32 output: accumulate directly into the VMEM-resident o_ref
# (its index_map is constant in k, so it stays resident across the K axis).
# ---------------------------------------------------------------------------
def _linear_tiled_kernel_f32(a_ref, w_ref, b_ref, o_ref):
    k = pl.program_id(2)

    @pl.when(k == 0)
    def _():
        # Fold the bias add into the accumulator init.
        o_ref[...] = jnp.broadcast_to(
            b_ref[...].astype(o_ref.dtype), o_ref.shape
        )

    o_ref[...] += lax.dot_general(
        a_ref[...],
        w_ref[...],
        dimension_numbers=(((1,), (1,)), ((), ())),
        preferred_element_type=jnp.float32,
    )


# Tiled kernel with an f32 scratch accumulator, for non-f32 output dtypes.
def _linear_tiled_kernel_acc(a_ref, w_ref, b_ref, o_ref, acc_ref):
    k = pl.program_id(2)

    @pl.when(k == 0)
    def _():
        acc_ref[...] = jnp.broadcast_to(
            b_ref[...].astype(jnp.float32), acc_ref.shape
        )

    acc_ref[...] += lax.dot_general(
        a_ref[...],
        w_ref[...],
        dimension_numbers=(((1,), (1,)), ((), ())),
        preferred_element_type=jnp.float32,
    )

    @pl.when(k == pl.num_programs(2) - 1)
    def _():
        o_ref[...] = acc_ref[...].astype(o_ref.dtype)


def custom_model_forward(
    a,
    b,
    weight,
    bias,
    *,
    tm=256,
    tn=512,
    tk=1024,
    vmem_limit_bytes=32 * 1024 * 1024,
    small_path_bytes=8 * 1024 * 1024,
    force_tiled=False,
):
    """Pallas equivalent of Custom_Model.forward(a, b) -> Linear(a)."""
    del b  # unused (see TODO at top of file)

    m, k_dim = a.shape
    n = weight.shape[0]
    out_dtype = a.dtype
    bias2d = bias.reshape(1, n)

    flops = 2 * m * n * k_dim
    bytes_accessed = (
        a.size * a.dtype.itemsize
        + weight.size * weight.dtype.itemsize
        + bias.size * bias.dtype.itemsize
        + m * n * jnp.dtype(out_dtype).itemsize
    )
    cost = pl.CostEstimate(
        flops=flops, transcendentals=0, bytes_accessed=bytes_accessed
    )

    # ----------------------- single-shot small path --------------------------
    if not force_tiled and bytes_accessed <= small_path_bytes:
        return pl.pallas_call(
            _linear_small_kernel,
            out_shape=jax.ShapeDtypeStruct((m, n), out_dtype),
            in_specs=[
                pl.BlockSpec(memory_space=pltpu.MemorySpace.VMEM),
                pl.BlockSpec(memory_space=pltpu.MemorySpace.VMEM),
                pl.BlockSpec(memory_space=pltpu.MemorySpace.VMEM),
            ],
            out_specs=pl.BlockSpec(memory_space=pltpu.MemorySpace.VMEM),
            cost_estimate=cost,
        )(a, weight, bias2d)

    # ------------------------------ tiled path --------------------------------
    # Clamp tiles to the (aligned) problem size: sublane multiple (8) on M,
    # lane multiple (128) on K and N.
    tm = min(tm, _round_up(m, 8))
    tk = min(tk, _round_up(k_dim, 128))
    tn = min(tn, _round_up(n, 128))

    # v7x megacore: if there is only one M tile, make sure the N axis splits
    # into >= 2 parallel tiles so the second TensorCore has work.
    if _round_up(m, tm) // tm == 1 and _round_up(n, tn) // tn < 2 and n > 128:
        tn = _round_up(max(128, _round_up(n, 128) // 2), 128)

    mp = _round_up(m, tm)
    kp = _round_up(k_dim, tk)
    np_ = _round_up(n, tn)

    a_p = a if (mp == m and kp == k_dim) else jnp.pad(
        a, ((0, mp - m), (0, kp - k_dim)))
    w_p = weight if (np_ == n and kp == k_dim) else jnp.pad(
        weight, ((0, np_ - n), (0, kp - k_dim)))
    b_p = bias2d if np_ == n else jnp.pad(bias2d, ((0, 0), (0, np_ - n)))

    grid = (mp // tm, np_ // tn, kp // tk)

    if jnp.dtype(out_dtype) == jnp.dtype(jnp.float32):
        kernel = _linear_tiled_kernel_f32
        scratch_shapes = []
    else:
        kernel = _linear_tiled_kernel_acc
        scratch_shapes = [pltpu.VMEM((tm, tn), jnp.float32)]

    out_p = pl.pallas_call(
        kernel,
        out_shape=jax.ShapeDtypeStruct((mp, np_), out_dtype),
        grid=grid,
        in_specs=[
            pl.BlockSpec((tm, tk), lambda i, j, k: (i, k)),   # activations
            pl.BlockSpec((tn, tk), lambda i, j, k: (j, k)),   # weight [OUT, IN]
            pl.BlockSpec((1, tn), lambda i, j, k: (0, j)),    # bias
        ],
        out_specs=pl.BlockSpec((tm, tn), lambda i, j, k: (i, j)),
        scratch_shapes=scratch_shapes,
        compiler_params=pltpu.CompilerParams(
            dimension_semantics=("parallel", "parallel", "arbitrary"),
            vmem_limit_bytes=vmem_limit_bytes,
        ),
        cost_estimate=cost,
    )(a_p, w_p, b_p)

    if mp == m and np_ == n:
        return out_p
    return out_p[:m, :n]


if __name__ == "__main__":
    # Small shapes consistent with nn.Linear(input_size, output_size).
    batch = 8
    input_size = 32
    output_size = 16

    key = jax.random.PRNGKey(0)
    k_a, k_b, k_w, k_bias = jax.random.split(key, 4)

    a = jax.random.normal(k_a, (batch, input_size), dtype=jnp.float32)
    b = jax.random.normal(k_b, (batch, input_size), dtype=jnp.float32)  # unused

    # Deterministic parameter init (PyTorch-style uniform bound 1/sqrt(fan_in)).
    bound = 1.0 / (input_size ** 0.5)
    weight = jax.random.uniform(
        k_w, (output_size, input_size), minval=-bound, maxval=bound,
        dtype=jnp.float32)
    bias = jax.random.uniform(
        k_bias, (output_size,), minval=-bound, maxval=bound,
        dtype=jnp.float32)

    ref = a @ weight.T + bias

    # Fast single-shot path (the one the shipped shapes actually use).
    out = custom_model_forward(a, b, weight, bias)
    out = jax.block_until_ready(out)
    assert out.shape == (batch, output_size)
    assert jnp.allclose(out, ref, atol=1e-5, rtol=1e-5)

    # Sanity-check the tiled path as well (same small shapes, forced tiled).
    out_tiled = custom_model_forward(a, b, weight, bias, force_tiled=True)
    out_tiled = jax.block_until_ready(out_tiled)
    assert out_tiled.shape == (batch, output_size)
    assert jnp.allclose(out_tiled, ref, atol=1e-5, rtol=1e-5)

    print("KERNEL_OK")
</pallas_src>

<mosaic_0001>
module attributes {stable_mosaic.version = 11 : i64} {
  func.func @_linear_small_kernel(%arg0: memref<8x32xf32, #tpu.memory_space<vmem>>, %arg1: memref<16x32xf32, #tpu.memory_space<vmem>>, %arg2: memref<1x16xf32, #tpu.memory_space<vmem>>, %arg3: memref<8x16xf32, #tpu.memory_space<vmem>>) attributes {dimension_semantics = [], scalar_prefetch = 0 : i64, scratch_operands = 0 : i64, tpu.core_type = #tpu.core_type<tc>} {
    %c0 = arith.constant 0 : index
    %c0_0 = arith.constant 0 : index
    %0 = vector.load %arg0[%c0, %c0_0] : memref<8x32xf32, #tpu.memory_space<vmem>>, vector<8x32xf32>
    %c0_1 = arith.constant 0 : index
    %c0_2 = arith.constant 0 : index
    %1 = vector.load %arg1[%c0_1, %c0_2] : memref<16x32xf32, #tpu.memory_space<vmem>>, vector<16x32xf32>
    %cst = arith.constant dense<0.000000e+00> : vector<8x16xf32>
    %2 = tpu.matmul %0, %1, %cst {dimension_numbers = #tpu.dot_dimension_numbers<[1], [1], [0], [0], [0, 0, 1, 0], [], []>} : vector<8x32xf32>, vector<16x32xf32>, vector<8x16xf32> -> vector<8x16xf32>
    %c0_3 = arith.constant 0 : index
    %c0_4 = arith.constant 0 : index
    %3 = vector.load %arg2[%c0_3, %c0_4] : memref<1x16xf32, #tpu.memory_space<vmem>>, vector<1x16xf32>
    %4 = vector.broadcast %3 : vector<1x16xf32> to vector<8x16xf32>
    %5 = arith.addf %2, %4 : vector<8x16xf32>
    %c0_5 = arith.constant 0 : index
    %c0_6 = arith.constant 0 : index
    %6 = vector.load %arg3[%c0_5, %c0_6] : memref<8x16xf32, #tpu.memory_space<vmem>>, vector<8x16xf32>
    tpu.vector_store %arg3[%c0_5, %c0_6], %5 {strides = array<i32>} : memref<8x16xf32, #tpu.memory_space<vmem>>, vector<8x16xf32>,
    return
  }
}

</mosaic_0001>

<llo_original>
// kernel: tpu_custom_call.1
$region0: #{tpu_custom_call.1}
  #allocation0 [shape = 'u32[]', space=smem, size = 0x4, offset = 0x4, fixed_abs, tag = 'smem constant byte address 0x4 - core index']
  #allocation1 [shape = 'u32[144,128]{1,0:T(1,128)}', space=vmem, size = 0x12000, scoped, tag = 'internal scratch']
  %s0 = inlined_call_operand.hbm [shape: f32[8,32], index: 0, kind: input, shape index: {}]
  %s1 = inlined_call_operand.hbm [shape: f32[16,32], index: 1, kind: input, shape index: {}]
  %s2 = inlined_call_operand.vmem [shape: f32[1,16], index: 2, kind: input, shape index: {}]
  %s3 = inlined_call_operand.hbm [shape: f32[8,16], index: 3, kind: output, shape index: {}]
  %s4 = sld [smem:[#allocation0]]
  $region30: #{tpu_custom_call.1} parent=0
    _
  %s6 = ssub.s32 1, %s4
  %s7 = scalar_select 0, %s6, %s4
  $region1: #{tpu_custom_call.1} parent=0
    #allocation2 [shape = 'u8[4096]{0}', space=vmem, size = 0x1000, scoped, tag = 'input window, operand 0, single buffered']
    #allocation3 [shape = 's32[1]{0}', space=sflag, size = 0x4, scoped, tag = 'scoped memory for tpu_custom_call.1']
    #allocation4 [shape = 's32[1]{0}', space=sflag, size = 0x4, scoped, tag = 'scoped memory for tpu_custom_call.1']
    #allocation5 [shape = 'u8[8192]{0}', space=vmem, size = 0x2000, scoped, tag = 'input window, operand 1, single buffered']
    #allocation6 [shape = 's32[1]{0}', space=sflag, size = 0x4, scoped, tag = 'scoped memory for tpu_custom_call.1']
    #allocation7 [shape = 'u8[4096]{0}', space=vmem, size = 0x1000, scoped, tag = 'output window, operand 0, single buffered']
    %8 = vsyncpa [#allocation3], 0
    %9 = vsyncpa [#allocation6], 0
    %10 = vsyncpa [#allocation4], 0
    // Predicated region
    $region2: #{tpu_custom_call.1} parent=1 // pred_check
      _
    $region3: #{tpu_custom_call.1} parent=1 // pred_check_branch
      %12 = sbr.rel (0) target = $region5
    $region4: #{tpu_custom_call.1} parent=1 // pred_region
      %s14 = ssub.s32 128, 128
      %15 = vsyncadd [#allocation3], %s14
      %s17 = sshll.u32 [#allocation2], 4
      %s18 = int_to_ptr.vmem [resolvable:$true] %s17
      %20 = dma.hbm_to_vmem [thread:$0]  %s0, 128, %s18, [#allocation3]
    $region5: #{tpu_custom_call.1} parent=1 // pred_fallthru
      _
    // Predicated region
    $region6: #{tpu_custom_call.1} parent=1 // pred_check
      _
    $region7: #{tpu_custom_call.1} parent=1 // pred_check_branch
      %22 = sbr.rel (0) target = $region9
    $region8: #{tpu_custom_call.1} parent=1 // pred_region
      %s24 = ssub.s32 256, 256
      %25 = vsyncadd [#allocation6], %s24
      %s26 = sshll.u32 [#allocation5], 4
      %s27 = int_to_ptr.vmem [resolvable:$true] %s26
      %32 = dma.hbm_to_vmem [thread:$0]  %s1, 256, %s27, [#allocation6], 128, 128, 8
    $region9: #{tpu_custom_call.1} parent=1 // pred_fallthru
      _
    // Predicated region
    $region10: #{tpu_custom_call.1} parent=1 // pred_check
      _
    $region11: #{tpu_custom_call.1} parent=1 // pred_check_branch
      %34 = sbr.rel (0) target = $region13
    $region12: #{tpu_custom_call.1} parent=1 // pred_region
      _
    $region13: #{tpu_custom_call.1} parent=1 // pred_fallthru
      _
    // Predicated region
    $region14: #{tpu_custom_call.1} parent=1 // pred_check
      _
    $region15: #{tpu_custom_call.1} parent=1 // pred_check_branch
      %36 = sbr.rel (0) target = $region17
    $region16: #{tpu_custom_call.1} parent=1 // pred_region
      %37 = dma.done [#allocation3], 128
    $region17: #{tpu_custom_call.1} parent=1 // pred_fallthru
      _
    // Predicated region
    $region18: #{tpu_custom_call.1} parent=1 // pred_check
      _
    $region19: #{tpu_custom_call.1} parent=1 // pred_check_branch
      %39 = sbr.rel (0) target = $region21
    $region20: #{tpu_custom_call.1} parent=1 // pred_region
      %40 = dma.done [#allocation6], 256
    $region21: #{tpu_custom_call.1} parent=1 // pred_fallthru
      _
    %v41 = vld [vmem:[#allocation2] sm:$0xff]
    %v42 = vld [vmem:[#allocation5] sm:$0xff]
    %v43 = vld [vmem:[#allocation5 + $0x8] sm:$0xff]
    %v44 = vld [vmem:[%s2] sm:$0x1]
    %v46 = vlaneseq
    %v47 = vshrl.u32 %v46, 7
    %v48 = vsub.s32 0, %v47
    %v49 = vrot.slane %v44, %v48
    %vm51 = vcmask 261120
    %v53 = vsel %vm51, %v41, 0
    %v56 = vsel %vm51, %v42, 0
    %v59 = vsel %vm51, %v43, 0
    %61 = vmatprep.subr.mxu0 0.0
    %62 = vmatpush1.xpose.msra.mxu0 %v56
    %63 = vmatprep.subr.mxu0 0.0
    %64 = vmatpush1.xpose.msra.mxu0 %v59
    %65 = vmatprep.subr.mxu0 0.0
    %66 = vmatpush1.xpose.msra.mxu0 0.0
    %67 = vmatprep.subr.mxu0 0.0
    %68 = vmatpush1.xpose.msra.mxu0 0.0
    %69 = vmatprep.subr.mxu0 0.0
    %70 = vmatpush1.xpose.msra.mxu0 0.0
    %71 = vmatprep.subr.mxu0 0.0
    %72 = vmatpush1.xpose.msra.mxu0 0.0
    %73 = vmatprep.subr.mxu0 0.0
    %74 = vmatpush1.xpose.msra.mxu0 0.0
    %75 = vmatprep.subr.mxu0 0.0
    %76 = vmatpush1.xpose.msra.mxu0 0.0
    %77 = vmatprep.subr.mxu0 0.0
    %78 = vmatpush1.xpose.msra.mxu0 0.0
    %79 = vmatprep.subr.mxu0 0.0
    %80 = vmatpush1.xpose.msra.mxu0 0.0
    %81 = vmatprep.subr.mxu0 0.0
    %82 = vmatpush1.xpose.msra.mxu0 0.0
    %83 = vmatprep.subr.mxu0 0.0
    %84 = vmatpush1.xpose.msra.mxu0 0.0
    %85 = vmatprep.subr.mxu0 0.0
    %86 = vmatpush1.xpose.msra.mxu0 0.0
    %87 = vmatprep.subr.mxu0 0.0
    %88 = vmatpush1.xpose.msra.mxu0 0.0
    %89 = vmatprep.subr.mxu0 0.0
    %90 = vmatpush1.xpose.msra.mxu0 0.0
    %91 = vmatprep.subr.mxu0 0.0
    %92 = vmatpush1.xpose.msra.mxu0 0.0
    %93 = vmatprep.subr.mxu0 0.0
    %94 = vmatpush1.xpose.msra.mxu0 0.0
    %95 = vmatprep.subr.mxu0 0.0
    %96 = vmatpush1.xpose.msra.mxu0 0.0
    %97 = vmatprep.subr.mxu0 0.0
    %98 = vmatpush1.xpose.msra.mxu0 0.0
    %99 = vmatprep.subr.mxu0 0.0
    %100 = vmatpush1.xpose.msra.mxu0 0.0
    %101 = vmatprep.subr.mxu0 0.0
    %102 = vmatpush1.xpose.msra.mxu0 0.0
    %103 = vmatprep.subr.mxu0 0.0
    %104 = vmatpush1.xpose.msra.mxu0 0.0
    %105 = vmatprep.subr.mxu0 0.0
    %106 = vmatpush1.xpose.msra.mxu0 0.0
    %107 = vmatprep.subr.mxu0 0.0
    %108 = vmatpush1.xpose.msra.mxu0 0.0
    %109 = vmatprep.subr.mxu0 0.0
    %110 = vmatpush1.xpose.msra.mxu0 0.0
    %111 = vmatprep.subr.mxu0 0.0
    %112 = vmatpush1.xpose.msra.mxu0 0.0
    %113 = vmatprep.subr.mxu0 0.0
    %114 = vmatpush1.xpose.msra.mxu0 0.0
    %115 = vmatprep.subr.mxu0 0.0
    %116 = vmatpush1.xpose.msra.mxu0 0.0
    %117 = vmatprep.subr.mxu0 0.0
    %118 = vmatpush1.xpose.msra.mxu0 0.0
    %119 = vmatprep.subr.mxu0 0.0
    %120 = vmatpush1.xpose.msra.mxu0 0.0
    %121 = vmatprep.subr.mxu0 0.0
    %122 = vmatpush1.xpose.msra.mxu0 0.0
    %123 = vmatprep.subr.mxu0 0.0
    %124 = vmatpush1.xpose.msra.mxu0 0.0
    %125 = vmatprep.mubr.f32.mxu0 0.0
    %126 = vmatmul.mubr.f32.gmra.mrb[0].mxu0 %v53
    %v127 = vpop.f32.mrb[0].mxu0
    %v128 = vadd.f32 %v49, %v127
    %v129 = vpop.f32.mrb[0].mxu0
    %130 = vdwg.mxu0
    %vm131 = vcmask 130048
    %132 = vst.msk [vmem:[#allocation7] sm:$0xff] %vm131, %v128
    // Predicated region
    $region22: #{tpu_custom_call.1} parent=1 // pred_check
      _
    $region23: #{tpu_custom_call.1} parent=1 // pred_check_branch
      %134 = sbr.rel (0) target = $region25
    $region24: #{tpu_custom_call.1} parent=1 // pred_region
      %s136 = ssub.s32 128, 128
      %137 = vsyncadd [#allocation4], %s136
      %s139 = sshll.u32 [#allocation7], 4
      %s140 = int_to_ptr.vmem [resolvable:$true] %s139
      %142 = dma.vmem_to_hbm [thread:$0]  %s140, 128, %s3, [#allocation4]
    $region25: #{tpu_custom_call.1} parent=1 // pred_fallthru
      _
    // Predicated region
    $region26: #{tpu_custom_call.1} parent=1 // pred_check
      _
    $region27: #{tpu_custom_call.1} parent=1 // pred_check_branch
      %144 = sbr.rel (0) target = $region29
    $region28: #{tpu_custom_call.1} parent=1 // pred_region
      %145 = dma.done [#allocation4], 128
    $region29: #{tpu_custom_call.1} parent=1 // pred_fallthru
      _
    %146 = vsyncpa [#allocation3], 1
    %147 = vsyncpa [#allocation6], 1
    %148 = vsyncpa [#allocation4], 1

</llo_original>
